<compile_context>
chip_gen: v5e
topology: v5e:2x2
jax: 0.10.0
libtpu: 0.0.40
codegen_flags: <defaults>
</compile_context>

<pallas_src>
import functools

import jax
import jax.numpy as jnp
from jax import lax
from jax.experimental import pallas as pl
from jax.experimental.pallas import tpu as pltpu

_LANE = 128
_BLOCK_BUDGET = 2 * 1024 * 1024   # per-operand VMEM block budget (bytes)
_VMEM_LIMIT = 32 * 1024 * 1024    # explicit scoped-VMEM limit (safe on v5e/v6e/v7x)


# ---------------------------------------------------------------------------
# Kernels
# ---------------------------------------------------------------------------

def _sa_fused_kernel(x_ref, xt_ref, g_ref, o_ref):
    """Fused QK^T -> softmax -> PV for one (Bb, S, F) block of batches."""
    x = x_ref[...]    # (Bb, S, F)  queries
    xt = xt_ref[...]  # (Bb, S, F)  keys (contract over last dim; no transpose)

    att = lax.dot_general(
        x, xt,
        dimension_numbers=(((2,), (2,)), ((0,), (0,))),
        preferred_element_type=jnp.float32)              # (Bb, S, S) f32

    att = att - jnp.max(att, axis=-1, keepdims=True)
    p = jnp.exp(att)
    # Exact reciprocal (bit-level softmax parity); the 1/l scale is folded
    # after the PV matmul so only the small (Bb, S, 1) vector is divided.
    inv_l = 1.0 / jnp.sum(p, axis=-1, keepdims=True)

    g = g_ref[...].astype(jnp.float32)                   # keep PV math in f32
    out = lax.dot_general(
        p, g,
        dimension_numbers=(((2,), (1,)), ((0,), (0,))),
        preferred_element_type=jnp.float32)              # (Bb, S, F)
    o_ref[...] = (out * inv_l).astype(o_ref.dtype)


def _sa_att_softmax_kernel(x_ref, xt_ref, att_ref, acc_ref):
    """F-tiled pass 1: accumulate (S, S) logits over F tiles, softmax at end."""
    k = pl.program_id(1)

    @pl.when(k == 0)
    def _():
        acc_ref[...] = jnp.zeros_like(acc_ref)

    acc_ref[...] += lax.dot_general(
        x_ref[...], xt_ref[...],
        dimension_numbers=(((2,), (2,)), ((0,), (0,))),
        preferred_element_type=jnp.float32)

    @pl.when(k == pl.num_programs(1) - 1)
    def _():
        a = acc_ref[...]
        a = a - jnp.max(a, axis=-1, keepdims=True)
        p = jnp.exp(a)
        p = p * (1.0 / jnp.sum(p, axis=-1, keepdims=True))
        att_ref[...] = p.astype(att_ref.dtype)


def _sa_pv_kernel(att_ref, g_ref, o_ref):
    """F-tiled pass 2: out F-tile = att @ g F-tile (lane-dense output)."""
    out = lax.dot_general(
        att_ref[...], g_ref[...].astype(jnp.float32),
        dimension_numbers=(((2,), (1,)), ((0,), (0,))),
        preferred_element_type=jnp.float32)
    o_ref[...] = out.astype(o_ref.dtype)


# ---------------------------------------------------------------------------
# pallas_call wrappers
# ---------------------------------------------------------------------------

def _pick_bb(batch, block_elem_bytes, budget):
    """Largest divisor of `batch` fitting the budget, keeping >=2 grid steps."""
    bb = 1
    for cand in range(1, batch + 1):
        if batch % cand:
            continue
        if cand * block_elem_bytes > budget:
            continue
        if batch >= 2 and batch // cand < 2:   # keep both v7x TCs busy
            continue
        bb = cand
    return bb


def _pick_f_tile(s, fp, itemsize, budget):
    """Largest 128-multiple tile of Fp fitting the per-operand budget."""
    best = _LANE
    for mult in range(1, fp // _LANE + 1):
        t = mult * _LANE
        if fp % t:
            continue
        if s * t * itemsize <= budget:
            best = t
    return best


def _fused_call(xf, xtf, gf, bb):
    b, s, fp = xf.shape
    spec = pl.BlockSpec((bb, s, fp), lambda i: (i, 0, 0))
    # NOTE: pipeline_mode=pl.Buffered(3) was considered for tiny blocks but
    # left at the default double-buffer to preserve VMEM headroom.
    return pl.pallas_call(
        _sa_fused_kernel,
        out_shape=jax.ShapeDtypeStruct((b, s, fp), xf.dtype),
        grid_spec=pltpu.PrefetchScalarGridSpec(
            num_scalar_prefetch=0,
            grid=(b // bb,),
            in_specs=[spec, spec, spec],
            out_specs=spec,
        ),
        compiler_params=pltpu.CompilerParams(
            dimension_semantics=("parallel",),
            vmem_limit_bytes=_VMEM_LIMIT,
            allow_input_fusion=[True, True, True],
        ),
    )(xf, xtf, gf)


def _tiled_call(xf, xtf, gf, ft):
    b, s, fp = xf.shape
    nk = fp // ft

    # Pass 1: attention logits (accumulated over F tiles) + softmax.
    x_spec = pl.BlockSpec((1, s, ft), lambda i, k: (i, 0, k))
    att_out_spec = pl.BlockSpec((1, s, s), lambda i, k: (i, 0, 0))
    att = pl.pallas_call(
        _sa_att_softmax_kernel,
        out_shape=jax.ShapeDtypeStruct((b, s, s), jnp.float32),
        grid_spec=pltpu.PrefetchScalarGridSpec(
            num_scalar_prefetch=0,
            grid=(b, nk),
            in_specs=[x_spec, x_spec],
            out_specs=att_out_spec,
            scratch_shapes=[pltpu.VMEM((1, s, s), jnp.float32)],
        ),
        compiler_params=pltpu.CompilerParams(
            dimension_semantics=("parallel", "arbitrary"),
            vmem_limit_bytes=_VMEM_LIMIT,
            allow_input_fusion=[True, True],
        ),
    )(xf, xtf)

    # Pass 2: out F-tiles = att @ g F-tiles.
    att_in_spec = pl.BlockSpec((1, s, s), lambda i, n: (i, 0, 0))
    g_spec = pl.BlockSpec((1, s, ft), lambda i, n: (i, 0, n))
    return pl.pallas_call(
        _sa_pv_kernel,
        out_shape=jax.ShapeDtypeStruct((b, s, fp), gf.dtype),
        grid_spec=pltpu.PrefetchScalarGridSpec(
            num_scalar_prefetch=0,
            grid=(b, nk),
            in_specs=[att_in_spec, g_spec],
            out_specs=g_spec,
        ),
        compiler_params=pltpu.CompilerParams(
            dimension_semantics=("parallel", "parallel"),
            vmem_limit_bytes=_VMEM_LIMIT,
            allow_input_fusion=[False, True],
        ),
    )(att, gf)


def sa_sagittal_block(x_, x_t, g_x, *, block_budget_bytes=_BLOCK_BUDGET):
    """JAX/Pallas equivalent of saSagittalBlock.forward.

    Args:
      x_, x_t, g_x: arrays of shape (B, C, H, W, S).
    Returns:
      array of shape (B, C, H, W, S).
    """
    B, C, H, W, S = x_.shape
    F = C * H * W
    itemsize = jnp.dtype(x_.dtype).itemsize

    def flatten(t):
        # permute(0,4,2,3,1) -> (B, S, H, W, C) -> (B, S, F); left to XLA and
        # fused into the kernel input DMAs via allow_input_fusion.
        return jnp.transpose(t, (0, 4, 2, 3, 1)).reshape(B, S, F)

    xf, xtf, gf = flatten(x_), flatten(x_t), flatten(g_x)

    # Keep the feature (lane) axis a multiple of 128: unmasked stores and a
    # guaranteed 128-aligned F tile.  Zero padding is exact: padded features
    # contribute 0 to QK^T and produce 0 output columns (sliced off below).
    Fp = -(-F // _LANE) * _LANE
    if Fp != F:
        pad = ((0, 0), (0, 0), (0, Fp - F))
        xf = jnp.pad(xf, pad)
        xtf = jnp.pad(xtf, pad)
        gf = jnp.pad(gf, pad)

    block_elem_bytes = S * Fp * itemsize
    if block_elem_bytes <= block_budget_bytes:
        bb = _pick_bb(B, block_elem_bytes, block_budget_bytes)
        out_flat = _fused_call(xf, xtf, gf, bb)
    else:
        ft = _pick_f_tile(S, Fp, itemsize, block_budget_bytes)
        out_flat = _tiled_call(xf, xtf, gf, ft)

    if Fp != F:
        out_flat = out_flat[:, :, :F]

    # view(B, S, H, W, C).permute(0,4,2,3,1) -> (B, C, H, W, S)
    out = out_flat.reshape(B, S, H, W, C)
    return jnp.transpose(out, (0, 4, 2, 3, 1))


# ---------------------------------------------------------------------------
# Pure-JAX reference (matches the PyTorch forward exactly)
# ---------------------------------------------------------------------------

def _reference(x_, x_t, g_x):
    B, C, H, W, S = x_.shape

    def flat(t):
        return jnp.transpose(t, (0, 4, 2, 3, 1)).reshape(B, S, -1)

    xf, xtf, gf = flat(x_), flat(x_t), flat(g_x)
    att = jnp.einsum("bsf,btf->bst", xf, xtf)
    att = jax.nn.softmax(att, axis=-1)
    out = jnp.einsum("bst,btf->bsf", att, gf)
    out = out.reshape(B, S, H, W, C)
    return jnp.transpose(out, (0, 4, 2, 3, 1))


if __name__ == "__main__":
    # saSagittalBlock has no learnable parameters (empty __init__).
    key = jax.random.PRNGKey(0)

    def run_case(idx, shape, block_budget_bytes=_BLOCK_BUDGET):
        k1, k2, k3 = jax.random.split(jax.random.fold_in(key, idx), 3)
        x_ = jax.random.normal(k1, shape, dtype=jnp.float32)
        x_t = jax.random.normal(k2, shape, dtype=jnp.float32)
        g_x = jax.random.normal(k3, shape, dtype=jnp.float32)

        fn = jax.jit(functools.partial(
            sa_sagittal_block, block_budget_bytes=block_budget_bytes))
        out = jax.block_until_ready(fn(x_, x_t, g_x))

        ref = _reference(x_, x_t, g_x)
        assert out.shape == shape
        assert jnp.allclose(out, ref, atol=1e-4, rtol=1e-4), (
            f"case {idx}: max abs diff {jnp.max(jnp.abs(out - ref))}")

    # Fused path: B=2, C=4, H=8, W=8, S=8 -> F=256 (lane-aligned), grid of 2.
    run_case(0, (2, 4, 8, 8, 8))
    # F-tiled path: force tiling with a small block budget (F=2048 -> 512-wide
    # F tiles, (S,S) f32 accumulator, softmax on the last tile).
    run_case(1, (2, 8, 16, 16, 8), block_budget_bytes=16 * 1024)
    # Lane-padding path: F = 3*5*5 = 75 -> zero-padded to 128 lanes.
    run_case(2, (2, 3, 5, 5, 8))

    print("KERNEL_OK")
</pallas_src>

<mosaic_0001>
module attributes {stable_mosaic.version = 11 : i64} {
  func.func @_sa_fused_kernel(%arg0: i32, %arg1: memref<1x8x256xf32, #tpu.memory_space<vmem>>, %arg2: memref<1x8x256xf32, #tpu.memory_space<vmem>>, %arg3: memref<1x8x256xf32, #tpu.memory_space<vmem>>, %arg4: memref<1x8x256xf32, #tpu.memory_space<vmem>>) attributes {dimension_semantics = [#tpu.dimension_semantics<parallel>], iteration_bounds = array<i64: 2>, scalar_prefetch = 0 : i64, scratch_operands = 0 : i64, tpu.core_type = #tpu.core_type<tc>, window_params = [{transform_indices = @transform_0, window_bounds = array<i64: 1, 8, 256>}, {transform_indices = @transform_1, window_bounds = array<i64: 1, 8, 256>}, {transform_indices = @transform_2, window_bounds = array<i64: 1, 8, 256>}, {transform_indices = @transform_3, window_bounds = array<i64: 1, 8, 256>}]} {
    %c0 = arith.constant 0 : index
    %c0_0 = arith.constant 0 : index
    %c0_1 = arith.constant 0 : index
    %0 = vector.load %arg1[%c0, %c0_0, %c0_1] : memref<1x8x256xf32, #tpu.memory_space<vmem>>, vector<1x8x256xf32>
    %c0_2 = arith.constant 0 : index
    %c0_3 = arith.constant 0 : index
    %c0_4 = arith.constant 0 : index
    %1 = vector.load %arg2[%c0_2, %c0_3, %c0_4] : memref<1x8x256xf32, #tpu.memory_space<vmem>>, vector<1x8x256xf32>
    %cst = arith.constant dense<0.000000e+00> : vector<1x8x8xf32>
    %2 = tpu.matmul %0, %1, %cst {dimension_numbers = #tpu.dot_dimension_numbers<[2], [2], [1], [1], [0, 0, 0, 1, 1, 1], [0], [0]>} : vector<1x8x256xf32>, vector<1x8x256xf32>, vector<1x8x8xf32> -> vector<1x8x8xf32>
    %cst_5 = arith.constant dense<0xFF800000> : vector<1x8xf32>
    %3 = vector.multi_reduction <maximumf>, %2, %cst_5 [2] : vector<1x8x8xf32> to vector<1x8xf32>
    %4 = vector.shape_cast %3 : vector<1x8xf32> to vector<1x8x1xf32>
    %5 = vector.broadcast %4 : vector<1x8x1xf32> to vector<1x8x8xf32>
    %6 = arith.subf %2, %5 : vector<1x8x8xf32>
    %7 = math.exp %6 : vector<1x8x8xf32>
    %cst_6 = arith.constant dense<0.000000e+00> : vector<1x8xf32>
    %8 = vector.multi_reduction <add>, %7, %cst_6 [2] : vector<1x8x8xf32> to vector<1x8xf32>
    %9 = vector.shape_cast %8 : vector<1x8xf32> to vector<1x8x1xf32>
    %cst_7 = arith.constant 1.000000e+00 : f32
    %10 = vector.broadcast %cst_7 : f32 to vector<1x8x1xf32>
    %11 = arith.divf %10, %9 : vector<1x8x1xf32>
    %c0_8 = arith.constant 0 : index
    %c0_9 = arith.constant 0 : index
    %c0_10 = arith.constant 0 : index
    %12 = vector.load %arg3[%c0_8, %c0_9, %c0_10] : memref<1x8x256xf32, #tpu.memory_space<vmem>>, vector<1x8x256xf32>
    %cst_11 = arith.constant dense<0.000000e+00> : vector<1x8x256xf32>
    %13 = tpu.matmul %7, %12, %cst_11 {dimension_numbers = #tpu.dot_dimension_numbers<[2], [1], [1], [2], [0, 0, 0, 1, 1, 2], [0], [0]>} : vector<1x8x8xf32>, vector<1x8x256xf32>, vector<1x8x256xf32> -> vector<1x8x256xf32>
    %14 = vector.broadcast %11 : vector<1x8x1xf32> to vector<1x8x256xf32>
    %15 = arith.mulf %13, %14 : vector<1x8x256xf32>
    %c0_12 = arith.constant 0 : index
    %c0_13 = arith.constant 0 : index
    %c0_14 = arith.constant 0 : index
    %16 = vector.load %arg4[%c0_12, %c0_13, %c0_14] : memref<1x8x256xf32, #tpu.memory_space<vmem>>, vector<1x8x256xf32>
    tpu.vector_store %arg4[%c0_12, %c0_13, %c0_14], %15 {strides = array<i32>} : memref<1x8x256xf32, #tpu.memory_space<vmem>>, vector<1x8x256xf32>,
    return
  }
  func.func @transform_0(%arg0: i32) -> (i32, i32, i32) {
    %c0_i32 = arith.constant 0 : i32
    %c0_i32_0 = arith.constant 0 : i32
    %c0_i32_1 = arith.constant 0 : i32
    return %arg0, %c0_i32, %c0_i32_0 : i32, i32, i32
  }
  func.func @transform_1(%arg0: i32) -> (i32, i32, i32) {
    %c0_i32 = arith.constant 0 : i32
    %c0_i32_0 = arith.constant 0 : i32
    %c0_i32_1 = arith.constant 0 : i32
    return %arg0, %c0_i32, %c0_i32_0 : i32, i32, i32
  }
  func.func @transform_2(%arg0: i32) -> (i32, i32, i32) {
    %c0_i32 = arith.constant 0 : i32
    %c0_i32_0 = arith.constant 0 : i32
    %c0_i32_1 = arith.constant 0 : i32
    return %arg0, %c0_i32, %c0_i32_0 : i32, i32, i32
  }
  func.func @transform_3(%arg0: i32) -> (i32, i32, i32) {
    %c0_i32 = arith.constant 0 : i32
    %c0_i32_0 = arith.constant 0 : i32
    %c0_i32_1 = arith.constant 0 : i32
    return %arg0, %c0_i32, %c0_i32_0 : i32, i32, i32
  }
}

</mosaic_0001>

<llo_original>
// kernel: sa_sagittal_block.1
$region0: #{sa_sagittal_block.1}
  #allocation0 [shape = 'u32[]', space=smem, size = 0x4, offset = 0x4, fixed_abs, tag = 'smem constant byte address 0x4 - core index']
  #allocation1 [shape = 'u32[72,128]{1,0:T(1,128)}', space=vmem, size = 0x9000, scoped, tag = 'internal scratch']
  %s0 = inlined_call_operand.vmem [shape: f32[2,8,256], index: 0, kind: input, shape index: {}]
  %s1 = inlined_call_operand.vmem [shape: f32[2,8,256], index: 1, kind: input, shape index: {}]
  %s2 = inlined_call_operand.vmem [shape: f32[2,8,256], index: 2, kind: input, shape index: {}]
  %s3 = inlined_call_operand.vmem [shape: f32[2,8,256], index: 3, kind: output, shape index: {}]
  %s4 = sld [smem:[#allocation0]]
  $region45: #{sa_sagittal_block.1} parent=0
    _
  %s6 = ssub.s32 1, %s4
  %s7 = scalar_select 0, %s6, %s4
  loop: start=0, step=1, limit=4
  $region2: #{sa_sagittal_block.1} parent=0 // loop_pre_header
    _
  $region3: #{sa_sagittal_block.1} parent=0 // loop_header
    %s9 = sphi 0, %s13
    %p10 = scmp.ge.s32.totalorder %s9, 4
    %s19 = sphi 0, %s21
    %s22 = sphi 0, %s19
    %s23 = sphi 0, %s22
    %s39 = sphi 0, %s23
    %s45 = sphi 0, %s47
    %s48 = sphi 0, %s45
    %s49 = sphi 0, %s48
    %s65 = sphi 0, %s49
    %s71 = sphi 0, %s73
    %s74 = sphi 0, %s71
    %s75 = sphi 0, %s74
    %s91 = sphi 0, %s75
    %s97 = sphi 0, %s99
    %s100 = sphi 0, %s97
    %s101 = sphi 0, %s100
    %s117 = sphi 0, %s101
  $region4: #{sa_sagittal_block.1} parent=0 // loop_header_branch
    %12 = sbr.rel (%p10) target = $region8
  $region5: #{sa_sagittal_block.1} parent=0 // loop_body
    %s14 = ssub.s32 %s9, 1
    %s15 = ssub.s32 %s9, 2
    %s16 = sadd.s32 %s9, 1
    %s17 = ssub.s32 %s9, %s16
    %p18 = scmp.eq.s32.totalorder %s17, 0
    %s20 = sadd.s32 %s19, 1
    %s21 = scalar_select %p18, %s19, %s20
    %p24 = pneg %p18
    %p25 = scmp.eq.s32.totalorder %s9, 1
    %p26 = por %p24, %p25
    %p27 = scmp.ne.s32.totalorder %s19, %s22
    %p28 = scmp.eq.s32.totalorder %s9, 0
    %p29 = por %p27, %p28
    %p30 = scmp.ne.s32.totalorder %s19, %s22
    %p31 = scmp.eq.s32.totalorder %s14, 1
    %p32 = por %p30, %p31
    %p33 = scmp.ne.s32.totalorder %s22, %s23
    %p34 = scmp.eq.s32.totalorder %s14, 0
    %p35 = por %p33, %p34
    %p36 = scmp.ne.s32.totalorder %s22, %s23
    %p37 = scmp.eq.s32.totalorder %s15, 1
    %p38 = por %p36, %p37
    %p40 = scmp.ne.s32.totalorder %s23, %s39
    %p41 = scmp.eq.s32.totalorder %s15, 0
    %p42 = por %p40, %p41
    %s43 = ssub.s32 %s9, %s16
    %p44 = scmp.eq.s32.totalorder %s43, 0
    %s46 = sadd.s32 %s45, 1
    %s47 = scalar_select %p44, %s45, %s46
    %p50 = pneg %p44
    %p51 = scmp.eq.s32.totalorder %s9, 1
    %p52 = por %p50, %p51
    %p53 = scmp.ne.s32.totalorder %s45, %s48
    %p54 = scmp.eq.s32.totalorder %s9, 0
    %p55 = por %p53, %p54
    %p56 = scmp.ne.s32.totalorder %s45, %s48
    %p57 = scmp.eq.s32.totalorder %s14, 1
    %p58 = por %p56, %p57
    %p59 = scmp.ne.s32.totalorder %s48, %s49
    %p60 = scmp.eq.s32.totalorder %s14, 0
    %p61 = por %p59, %p60
    %p62 = scmp.ne.s32.totalorder %s48, %s49
    %p63 = scmp.eq.s32.totalorder %s15, 1
    %p64 = por %p62, %p63
    %p66 = scmp.ne.s32.totalorder %s49, %s65
    %p67 = scmp.eq.s32.totalorder %s15, 0
    %p68 = por %p66, %p67
    %s69 = ssub.s32 %s9, %s16
    %p70 = scmp.eq.s32.totalorder %s69, 0
    %s72 = sadd.s32 %s71, 1
    %s73 = scalar_select %p70, %s71, %s72
    %p76 = pneg %p70
    %p77 = scmp.eq.s32.totalorder %s9, 1
    %p78 = por %p76, %p77
    %p79 = scmp.ne.s32.totalorder %s71, %s74
    %p80 = scmp.eq.s32.totalorder %s9, 0
    %p81 = por %p79, %p80
    %p82 = scmp.ne.s32.totalorder %s71, %s74
    %p83 = scmp.eq.s32.totalorder %s14, 1
    %p84 = por %p82, %p83
    %p85 = scmp.ne.s32.totalorder %s74, %s75
    %p86 = scmp.eq.s32.totalorder %s14, 0
    %p87 = por %p85, %p86
    %p88 = scmp.ne.s32.totalorder %s74, %s75
    %p89 = scmp.eq.s32.totalorder %s15, 1
    %p90 = por %p88, %p89
    %p92 = scmp.ne.s32.totalorder %s75, %s91
    %p93 = scmp.eq.s32.totalorder %s15, 0
    %p94 = por %p92, %p93
    %s95 = ssub.s32 %s9, %s16
    %p96 = scmp.eq.s32.totalorder %s95, 0
    %s98 = sadd.s32 %s97, 1
    %s99 = scalar_select %p96, %s97, %s98
    %p102 = pneg %p96
    %p103 = scmp.eq.s32.totalorder %s9, 1
    %p104 = por %p102, %p103
    %p105 = scmp.ne.s32.totalorder %s97, %s100
    %p106 = scmp.eq.s32.totalorder %s9, 0
    %p107 = por %p105, %p106
    %p108 = scmp.ne.s32.totalorder %s97, %s100
    %p109 = scmp.eq.s32.totalorder %s14, 1
    %p110 = por %p108, %p109
    %p111 = scmp.ne.s32.totalorder %s100, %s101
    %p112 = scmp.eq.s32.totalorder %s14, 0
    %p113 = por %p111, %p112
    %p114 = scmp.ne.s32.totalorder %s100, %s101
    %p115 = scmp.eq.s32.totalorder %s15, 1
    %p116 = por %p114, %p115
    %p118 = scmp.ne.s32.totalorder %s101, %s117
    %p119 = scmp.eq.s32.totalorder %s15, 0
    %p120 = por %p118, %p119
    %p121 = scmp.le.s32.totalorder 1, %s9
    %p122 = scmp.lt.s32.totalorder %s9, 3
    %p123 = pnand %p121, %p122
    %p124 = pneg %p123
    // Predicated region
    $region9: #{sa_sagittal_block.1} parent=5 // pred_check
      _
    $region10: #{sa_sagittal_block.1} parent=5 // pred_check_branch
      %126 = sbr.rel (%p123) target = $region12
    $region11: #{sa_sagittal_block.1} parent=5 // pred_region
      %s127 = ssub.s32 %s9, 1
    $region12: #{sa_sagittal_block.1} parent=5 // pred_fallthru
      _
    %p128 = scmp.lt.s32.totalorder %s9, 2
    // Predicated region
    $region13: #{sa_sagittal_block.1} parent=5 // pred_check
      %p129 = pneg %p128
    $region14: #{sa_sagittal_block.1} parent=5 // pred_check_branch
      %131 = sbr.rel (%p129) target = $region16
    $region15: #{sa_sagittal_block.1} parent=5 // pred_region
      // Predicated region
      $region17: #{sa_sagittal_block.1} parent=15 // pred_check
        %p132 = pneg %p29
      $region18: #{sa_sagittal_block.1} parent=15 // pred_check_branch
        %134 = sbr.rel (%p132) target = $region20
      $region19: #{sa_sagittal_block.1} parent=15 // pred_region
        %p135 = scmp.lt.s32.totalorder %s9, 1
        %s136 = scalar_select %p135, %s9, 1
        %s137 = smul.addr %s136, 2
        %s138 = smul.addr %s137, 8
        %s139 = scalar_lea.vmem %s0, %s138
      $region20: #{sa_sagittal_block.1} parent=15 // pred_fallthru
        _
      // Predicated region
      $region21: #{sa_sagittal_block.1} parent=15 // pred_check
        %p140 = pneg %p55
      $region22: #{sa_sagittal_block.1} parent=15 // pred_check_branch
        %142 = sbr.rel (%p140) target = $region24
      $region23: #{sa_sagittal_block.1} parent=15 // pred_region
        %p143 = scmp.lt.s32.totalorder %s9, 1
        %s144 = scalar_select %p143, %s9, 1
        %s145 = smul.addr %s144, 2
        %s146 = smul.addr %s145, 8
        %s147 = scalar_lea.vmem %s1, %s146
      $region24: #{sa_sagittal_block.1} parent=15 // pred_fallthru
        _
      // Predicated region
      $region25: #{sa_sagittal_block.1} parent=15 // pred_check
        %p148 = pneg %p81
      $region26: #{sa_sagittal_block.1} parent=15 // pred_check_branch
        %150 = sbr.rel (%p148) target = $region28
      $region27: #{sa_sagittal_block.1} parent=15 // pred_region
        %p151 = scmp.lt.s32.totalorder %s9, 1
        %s152 = scalar_select %p151, %s9, 1
        %s153 = smul.addr %s152, 2
        %s154 = smul.addr %s153, 8
        %s155 = scalar_lea.vmem %s2, %s154
      $region28: #{sa_sagittal_block.1} parent=15 // pred_fallthru
        _
    $region16: #{sa_sagittal_block.1} parent=5 // pred_fallthru
      _
    %p156 = scmp.le.s32.totalorder 1, %s9
    %p157 = scmp.lt.s32.totalorder %s9, 3
    %p158 = pnand %p156, %p157
    %p159 = pneg %p158
    // Predicated region
    $region29: #{sa_sagittal_block.1} parent=5 // pred_check
      _
    $region30: #{sa_sagittal_block.1} parent=5 // pred_check_branch
      %161 = sbr.rel (%p158) target = $region32
    $region31: #{sa_sagittal_block.1} parent=5 // pred_region
      %s162 = ssub.s32 %s9, 1
      %p163 = scmp.lt.s32.totalorder %s14, 1
      %s164 = scalar_select %p163, %s14, 1
      %s165 = smul.addr %s164, 2
      %s166 = smul.addr %s165, 8
      %s167 = scalar_lea.vmem %s0, %s166
      %p168 = pneg %p35
      %p169 = pneg %p32
      %p170 = scmp.lt.s32.totalorder %s14, 1
      %s171 = scalar_select %p170, %s14, 1
      %s172 = smul.addr %s171, 2
      %s173 = smul.addr %s172, 8
      %s174 = scalar_lea.vmem %s1, %s173
      %p175 = pneg %p61
      %p176 = pneg %p58
      %p177 = scmp.lt.s32.totalorder %s14, 1
      %s178 = scalar_select %p177, %s14, 1
      %s179 = smul.addr %s178, 2
      %s180 = smul.addr %s179, 8
      %s181 = scalar_lea.vmem %s2, %s180
      %p182 = pneg %p87
      %p183 = pneg %p84
      %p184 = pneg %p113
      %p185 = pneg %p110
      %p186 = scmp.lt.s32.totalorder %s14, 1
      %s187 = scalar_select %p186, %s14, 1
      %s188 = smul.addr %s187, 2
      %s189 = smul.addr %s188, 8
      %s190 = scalar_lea.vmem %s3, %s189
      %p191 = scmp.lt.s32.totalorder %s14, 1
      %s192 = scalar_select %p191, %s14, 1
      %s193 = smul.addr %s192, 2
      %s194 = smul.addr %s193, 8
      %s195 = scalar_lea.vmem %s0, %s194
      %p196 = scmp.lt.s32.totalorder %s14, 1
      %s197 = scalar_select %p196, %s14, 1
      %s198 = smul.addr %s197, 2
      %s199 = smul.addr %s198, 8
      %s200 = scalar_lea.vmem %s1, %s199
      %p201 = scmp.lt.s32.totalorder %s14, 1
      %s202 = scalar_select %p201, %s14, 1
      %s203 = smul.addr %s202, 2
      %s204 = smul.addr %s203, 8
      %s205 = scalar_lea.vmem %s2, %s204
      %p206 = scmp.lt.s32.totalorder %s14, 1
      %s207 = scalar_select %p206, %s14, 1
      %s208 = smul.addr %s207, 2
      %s209 = smul.addr %s208, 8
      %s210 = scalar_lea.vmem %s3, %s209
      %v211 = vld [vmem:[%s195] sm:$0xff]
      %v212 = vld [vmem:[%s195 + $0x8] sm:$0xff]
      %v213 = vld [vmem:[%s200] sm:$0xff]
      %v214 = vld [vmem:[%s200 + $0x8] sm:$0xff]
      %215 = vmatpush.xpose.msra.mxu0 0.0
      %216 = vmatpush.xpose.msra.mxu0 0.0
      %217 = vmatpush.xpose.msra.mxu0 0.0
      %218 = vmatpush.xpose.msra.mxu0 0.0
      %219 = vmatpush.xpose.msra.mxu0 0.0
      %220 = vmatpush.xpose.msra.mxu0 0.0
      %221 = vmatpush.xpose.msra.mxu0 0.0
      %222 = vmatpush.xpose.msra.mxu0 0.0
      %223 = vmatpush.xpose.msra.mxu0 0.0
      %224 = vmatpush.xpose.msra.mxu0 0.0
      %225 = vmatpush.xpose.msra.mxu0 0.0
      %226 = vmatpush.xpose.msra.mxu0 0.0
      %227 = vmatpush.xpose.msra.mxu0 0.0
      %228 = vmatpush.xpose.msra.mxu0 0.0
      %229 = vmatpush.xpose.msra.mxu0 0.0
      %230 = vmatpush.xpose.msra.mxu0 %v213
      %231 = vmatmul.f32.gmra.mxu0 %v211
      %v232 = vpop.f32.mrf.mxu0
      %v233 = vadd.f32 0.0, %v232
      %234 = vdwg.mxu0
      %235 = vmatpush.xpose.msra.mxu0 0.0
      %236 = vmatpush.xpose.msra.mxu0 0.0
      %237 = vmatpush.xpose.msra.mxu0 0.0
      %238 = vmatpush.xpose.msra.mxu0 0.0
      %239 = vmatpush.xpose.msra.mxu0 0.0
      %240 = vmatpush.xpose.msra.mxu0 0.0
      %241 = vmatpush.xpose.msra.mxu0 0.0
      %242 = vmatpush.xpose.msra.mxu0 0.0
      %243 = vmatpush.xpose.msra.mxu0 0.0
      %244 = vmatpush.xpose.msra.mxu0 0.0
      %245 = vmatpush.xpose.msra.mxu0 0.0
      %246 = vmatpush.xpose.msra.mxu0 0.0
      %247 = vmatpush.xpose.msra.mxu0 0.0
      %248 = vmatpush.xpose.msra.mxu0 0.0
      %249 = vmatpush.xpose.msra.mxu0 0.0
      %250 = vmatpush.xpose.msra.mxu0 %v214
      %251 = vmatmul.f32.gmra.mxu0 %v212
      %v252 = vpop.f32.mrf.mxu0
      %v253 = vadd.f32 %v233, %v252
      %254 = vdwg.mxu0
      %vm255 = vcmask 64512
      %v256 = vsel %vm255, %v253, -inf
      %257 = vmax.xlane.f32.xlu0 %v256
      %v258 = vpop.xlane.xlu0 %257
      %v259 = vsub.f32 %v253, %v258
      %v260 = vmul.f32 %v259, 1.442695
      %v261 = vpow.pop %v260
      %v262 = vsel %vm255, %v261, 0.0
      %263 = vadd.xlane.f32.xlu0 %v262
      %v264 = vpop.xlane.xlu0 %263
      %v265 = vrcp.pop %v264
      %v266 = vmul.f32 %v264, %v265
      %v267 = vsub.f32 1.0, %v266
      %v268 = vmul.f32 %v265, %v267
      %v269 = vadd.f32 %v265, %v268
      %vm270 = vweird.f32 %v264
      %vm271 = vweird.f32 %v265
      %vm272 = vmor %vm270, %vm271
      %v273 = vsel %vm272, %v265, %v269
      %v274 = vand.u32 2147483647, %v264
      %vm275 = vcmp.eq.f32.partialorder %v274, 8.507059e+37
      %v276 = vand.u32 %v264, 2147483648
      %v277 = vor.u32 1.1754944e-38, %v276
      %v278 = vsel %vm275, %v277, %v273
      %v279 = vmul.f32 1.0, %v278
      %v280 = vld [vmem:[%s205] sm:$0xff]
      %v281 = vld [vmem:[%s205 + $0x8] sm:$0xff]
      %v283 = vsel %vm255, %v261, 0
      %285 = vmatpush.msra.mxu0 0.0
      %286 = vmatpush.msra.mxu0 0.0
      %287 = vmatpush.msra.mxu0 0.0
      %288 = vmatpush.msra.mxu0 0.0
      %289 = vmatpush.msra.mxu0 0.0
      %290 = vmatpush.msra.mxu0 0.0
      %291 = vmatpush.msra.mxu0 0.0
      %292 = vmatpush.msra.mxu0 0.0
      %293 = vmatpush.msra.mxu0 0.0
      %294 = vmatpush.msra.mxu0 0.0
      %295 = vmatpush.msra.mxu0 0.0
      %296 = vmatpush.msra.mxu0 0.0
      %297 = vmatpush.msra.mxu0 0.0
      %298 = vmatpush.msra.mxu0 0.0
      %299 = vmatpush.msra.mxu0 0.0
      %300 = vmatpush.msra.mxu0 %v280
      %301 = vmatmul.f32.gmra.mxu0 %v283
      %v302 = vpop.f32.mrf.mxu0
      %v303 = vadd.f32 0.0, %v302
      %304 = vdwg.mxu0
      %305 = vmatpush.msra.mxu0 0.0
      %306 = vmatpush.msra.mxu0 0.0
      %307 = vmatpush.msra.mxu0 0.0
      %308 = vmatpush.msra.mxu0 0.0
      %309 = vmatpush.msra.mxu0 0.0
      %310 = vmatpush.msra.mxu0 0.0
      %311 = vmatpush.msra.mxu0 0.0
      %312 = vmatpush.msra.mxu0 0.0
      %313 = vmatpush.msra.mxu0 0.0
      %314 = vmatpush.msra.mxu0 0.0
      %315 = vmatpush.msra.mxu0 0.0
      %316 = vmatpush.msra.mxu0 0.0
      %317 = vmatpush.msra.mxu0 0.0
      %318 = vmatpush.msra.mxu0 0.0
      %319 = vmatpush.msra.mxu0 0.0
      %320 = vmatpush.msra.mxu0 %v281
      %321 = vmatmul.f32.gmra.mxu0 %v283
      %v322 = vpop.f32.mrf.mxu0
      %v323 = vadd.f32 0.0, %v322
      %324 = vdwg.mxu0
      %v325 = vmul.f32 %v303, %v279
      %v326 = vmul.f32 %v323, %v279
      %327 = vst [vmem:[%s210] sm:$0xff] %v325
      %328 = vst [vmem:[%s210 + $0x8] sm:$0xff] %v326
      %p329 = scmp.lt.s32.totalorder %s14, 1
      %s330 = scalar_select %p329, %s14, 1
      %s331 = smul.addr %s330, 2
      %s332 = smul.addr %s331, 8
      %s333 = scalar_lea.vmem %s3, %s332
      // Predicated region
      $region33: #{sa_sagittal_block.1} parent=31 // pred_check
        %p334 = pneg %p110
      $region34: #{sa_sagittal_block.1} parent=31 // pred_check_branch
        %336 = sbr.rel (%p334) target = $region36
      $region35: #{sa_sagittal_block.1} parent=31 // pred_region
        _
      $region36: #{sa_sagittal_block.1} parent=31 // pred_fallthru
        _
    $region32: #{sa_sagittal_block.1} parent=5 // pred_fallthru
      _
    %p337 = scmp.le.s32.totalorder 2, %s9
    // Predicated region
    $region37: #{sa_sagittal_block.1} parent=5 // pred_check
      %p338 = pneg %p337
    $region38: #{sa_sagittal_block.1} parent=5 // pred_check_branch
      %340 = sbr.rel (%p338) target = $region40
    $region39: #{sa_sagittal_block.1} parent=5 // pred_region
      %s341 = ssub.s32 %s9, 2
      // Predicated region
      $region41: #{sa_sagittal_block.1} parent=39 // pred_check
        %p342 = pneg %p116
      $region42: #{sa_sagittal_block.1} parent=39 // pred_check_branch
        %344 = sbr.rel (%p342) target = $region44
      $region43: #{sa_sagittal_block.1} parent=39 // pred_region
        %p345 = scmp.lt.s32.totalorder %s15, 1
        %s346 = scalar_select %p345, %s15, 1
        %s347 = smul.addr %s346, 2
        %s348 = smul.addr %s347, 8
        %s349 = scalar_lea.vmem %s3, %s348
      $region44: #{sa_sagittal_block.1} parent=39 // pred_fallthru
        _
    $region40: #{sa_sagittal_block.1} parent=5 // pred_fallthru
      _
  $region6: #{sa_sagittal_block.1} parent=0 // loop_footer
    %s13 = sadd.s32 1, %s9
  $region7: #{sa_sagittal_block.1} parent=0 // loop_footer_branch
    %8 = sbr.rel target = $region3
  $region8: #{sa_sagittal_block.1} parent=0 // loop_exit
    _

</llo_original>
